<compile_context>
chip_gen: v7x
topology: tpu7x:2x2x1
jax: 0.10.0
libtpu: 0.0.40
codegen_flags: <defaults>
</compile_context>

<pallas_src>
import functools

import numpy as np
import jax
import jax.numpy as jnp
from jax.experimental import pallas as pl
from jax.experimental.pallas import tpu as pltpu

LANES = 128


def _ceil_div(a, b):
    return -(-a // b)


# ---------------------------------------------------------------------------
# Static adaptive-pooling bins (trace time, numpy).
# PyTorch adaptive bins for input size C resized to L:
#   start_i = floor(i*C/L), end_i = ceil((i+1)*C/L)
# binned[:, i] = max over c in [start_i, end_i) of pooled[:, c]
#              = max_j (pooled @ sel[j])[:, i]   with one-hot sel matrices.
# ---------------------------------------------------------------------------
def adaptive_bin_select_mats(c_in, l_out, c_pad):
    i = np.arange(l_out)
    start = (i * c_in) // l_out
    end = _ceil_div((i + 1) * c_in, l_out)
    width = int(np.max(end - start))            # <= 2 whenever C <= L
    sel = np.zeros((width, c_pad, l_out), np.float32)
    for j in range(width):
        idx = np.minimum(start + j, end - 1)    # clamp -> duplicates, harmless under max
        sel[j, idx, i] = 1.0
    return sel


# ---------------------------------------------------------------------------
# Fused kernel: conv + ReLU + length-max + adaptive binning + FC head.
# ---------------------------------------------------------------------------
def cnn_fused_kernel(x_ref, wconv_ref, bconv_ref, sel_ref, w1_ref, b1_ref,
                     w2_ref, b2_ref, out_ref, *, K, pad):
    Bblk, Cin, L = x_ref.shape
    n_sel = sel_ref.shape[0]

    # --- Conv1d('same', stride 1) as ONE im2col matmul ----------------------
    # NCL -> NLC in-kernel (XLU transpose; no wrapper-side HBM pass).
    x = jnp.transpose(x_ref[...], (0, 2, 1))                    # (Bblk, L, Cin) f32
    if pad > 0:
        zp = jnp.zeros((Bblk, pad, Cin), x.dtype)
        x = jnp.concatenate([zp, x, zp], axis=1)                # zero 'same' pad in VMEM
    # lhs[(b,l), k*Cin+ci] = x_pad[b, l+k, ci]
    lhs = jnp.concatenate([x[:, k:k + L, :] for k in range(K)], axis=-1)
    lhs = lhs.reshape(Bblk * L, K * Cin).astype(jnp.bfloat16)   # batch folded into M
    acc = jnp.dot(lhs, wconv_ref[...],
                  preferred_element_type=jnp.float32)           # (Bblk*L, Cpad) f32
    acc = jnp.maximum(acc + bconv_ref[...], 0.0)                # bias + ReLU (f32)

    # --- adaptive_max_pool2d((C, L) -> (L, 1)) -------------------------------
    # W-reduction: max over the length axis.
    pooled = jnp.max(acc.reshape(Bblk, L, -1), axis=1)          # (Bblk, Cpad) f32
    # H-reduction: adaptive max over static channel bins via one-hot matmuls
    # (no (B, L, C) broadcast intermediate).
    pooled_b = pooled.astype(jnp.bfloat16)
    binned = jnp.dot(pooled_b, sel_ref[0], preferred_element_type=jnp.float32)
    for j in range(1, n_sel):                                   # n_sel <= 2 when C <= L
        binned = jnp.maximum(
            binned,
            jnp.dot(pooled_b, sel_ref[j], preferred_element_type=jnp.float32))
    # binned == x.view(B, -1), shape (Bblk, L)

    # --- FC head -------------------------------------------------------------
    # ConstantPad1d((0, w_size-L)) + Linear(w_size, H) folded into the first L
    # weight rows (the padded features are exactly zero).
    # TODO(synk): training-mode dropout (random masking) is not implemented.
    h = jnp.dot(binned.astype(jnp.bfloat16), w1_ref[...],
                preferred_element_type=jnp.float32) + b1_ref[...]
    h = jnp.maximum(h, 0.0)
    y = jnp.dot(h.astype(jnp.bfloat16), w2_ref[...],
                preferred_element_type=jnp.float32) + b2_ref[...]
    out_ref[...] = y                                             # (Bblk, out) f32


# ---------------------------------------------------------------------------
# Batch-block choice: grid=(1,) while tiny; otherwise a multiple of 8 dividing
# B whose folded M = Bblk*L is a multiple of 256 when possible (v6e/v7x MXU
# tile, also 128-aligned for v5e) and whose working set stays far under 32 MiB.
# ---------------------------------------------------------------------------
def _choose_block_b(B, L):
    if B * L <= 4096 or B % 8 != 0:
        return B
    cands = [b for b in range(8, B + 1, 8) if B % b == 0 and b * L <= 8192]
    if not cands:
        return 8
    aligned = [b for b in cands if (b * L) % 256 == 0]
    return max(aligned) if aligned else max(cands)


# ---------------------------------------------------------------------------
# Wrapper
# ---------------------------------------------------------------------------
def cnn_forward(x_ncl, xr, params, *, w_size, block_b=None):
    """Forward pass of the CNN module.  x_ncl: (B, Cin, L) f32, PyTorch NCL."""
    del xr                                   # xr=False in the module default
    B, Cin, L = x_ncl.shape
    wconv, bconv = params["wconv"], params["bconv"]      # (K, Cin, Cout), (1, Cout)
    w1, b1, w2, b2 = params["w1"], params["b1"], params["w2"], params["b2"]
    K, _, Cout = wconv.shape
    assert K % 2 == 1, "padding=int((K-1)/2) reproduces 'same' only for odd K"
    pad = (K - 1) // 2
    H = w1.shape[1]
    out_dim = w2.shape[1]
    assert L <= w_size

    # --- one-time weight layout (tiny tensors, not on the activation path) ---
    cpad = _ceil_div(Cout, LANES) * LANES                        # lane-pad N dim
    w2d = jnp.pad(wconv.reshape(K * Cin, Cout),
                  ((0, 0), (0, cpad - Cout))).astype(jnp.bfloat16)
    bconv_p = jnp.pad(bconv, ((0, 0), (0, cpad - Cout))).astype(jnp.float32)
    sel = jnp.asarray(adaptive_bin_select_mats(Cout, L, cpad), jnp.bfloat16)
    n_sel = sel.shape[0]
    w1_used = w1[:L, :].astype(jnp.bfloat16)                     # pad->Linear folded
    w2_b = w2.astype(jnp.bfloat16)
    b1_f = b1.astype(jnp.float32)
    b2_f = b2.astype(jnp.float32)

    Bblk = _choose_block_b(B, L) if block_b is None else block_b
    assert B % Bblk == 0 and (Bblk == B or Bblk % 8 == 0)

    flops = (2 * B * L * (K * Cin) * cpad            # conv im2col matmul
             + 2 * B * cpad * L * n_sel              # bin selection matmuls
             + 2 * B * L * H + 2 * B * H * out_dim)  # FC head
    bytes_accessed = int(x_ncl.size * 4 + w2d.size * 2 + bconv_p.size * 4
                         + sel.size * 2 + w1_used.size * 2 + b1_f.size * 4
                         + w2_b.size * 2 + b2_f.size * 4 + B * out_dim * 4)

    out = pl.pallas_call(
        functools.partial(cnn_fused_kernel, K=K, pad=pad),
        out_shape=jax.ShapeDtypeStruct((B, out_dim), jnp.float32),
        grid=(B // Bblk,),
        in_specs=[
            pl.BlockSpec((Bblk, Cin, L), lambda b: (b, 0, 0)),       # activations (NCL)
            pl.BlockSpec((K * Cin, cpad), lambda b: (0, 0)),         # conv weight (const)
            pl.BlockSpec((1, cpad), lambda b: (0, 0)),               # conv bias
            pl.BlockSpec((n_sel, cpad, L), lambda b: (0, 0, 0)),     # bin one-hots
            pl.BlockSpec((L, H), lambda b: (0, 0)),                  # w1[:L]
            pl.BlockSpec((1, H), lambda b: (0, 0)),                  # b1
            pl.BlockSpec((H, out_dim), lambda b: (0, 0)),            # w2
            pl.BlockSpec((1, out_dim), lambda b: (0, 0)),            # b2
        ],
        out_specs=pl.BlockSpec((Bblk, out_dim), lambda b: (b, 0)),
        compiler_params=pltpu.CompilerParams(
            dimension_semantics=("parallel",),
            vmem_limit_bytes=32 * 1024 * 1024),
        cost_estimate=pl.CostEstimate(flops=flops, transcendentals=0,
                                      bytes_accessed=bytes_accessed),
    )(x_ncl, w2d, bconv_p, sel, w1_used, b1_f, w2_b, b2_f)
    return out


# ---------------------------------------------------------------------------
# Pure-JAX f32 reference (mirrors the PyTorch forward) for a sanity check.
# ---------------------------------------------------------------------------
def cnn_reference(x_ncl, params, *, w_size):
    B, Cin, L = x_ncl.shape
    wconv = params["wconv"]
    K = wconv.shape[0]
    pad = (K - 1) // 2
    xp = jnp.pad(x_ncl, ((0, 0), (0, 0), (pad, pad)))
    conv = sum(jnp.einsum("bcl,co->bol", xp[:, :, k:k + L], wconv[k]) for k in range(K))
    conv = jax.nn.relu(conv + params["bconv"].reshape(1, -1, 1))     # (B, C, L)
    pooled = jnp.max(conv, axis=2)                                   # (B, C)
    C = pooled.shape[1]
    i = np.arange(L)
    start = (i * C) // L
    end = _ceil_div((i + 1) * C, L)
    binned = jnp.stack([jnp.max(pooled[:, s:e], axis=1) for s, e in zip(start, end)],
                       axis=1)                                       # (B, L)
    feat = jnp.pad(binned, ((0, 0), (0, w_size - L)))                # ConstantPad1d
    h = jax.nn.relu(feat @ params["w1"] + params["b1"])
    return h @ params["w2"] + params["b2"]


# ---------------------------------------------------------------------------
# Deterministic synthetic parameters (shapes follow the module, scaled down).
# ---------------------------------------------------------------------------
def init_params(key, cin, cout, K, w_size, fc_hidden, out):
    def u(k, shape, scale=0.1):
        return jax.random.uniform(k, shape, jnp.float32, -scale, scale)

    ks = jax.random.split(key, 6)
    return {
        # Conv1d weight in kernel layout (K, Cin, Cout) == torch (Cout,Cin,K).permute(2,1,0)
        "wconv": u(ks[0], (K, cin, cout)),
        "bconv": u(ks[1], (1, cout)),
        "w1": u(ks[2], (w_size, fc_hidden)),     # Linear(w_size, H).weight.T
        "b1": u(ks[3], (1, fc_hidden)),
        "w2": u(ks[4], (fc_hidden, out)),        # Linear(H, out).weight.T
        "b2": u(ks[5], (1, out)),
    }


if __name__ == "__main__":
    # Small shapes consistent with the module (scaled down from the defaults):
    B = 2            # batch
    INC = 4          # inc (input channels)
    L = 16           # sequence length
    NB_FILT = 3      # nb_filtres=[3]  -> Cout = INC * 3 = 12
    K = 3            # ker_size=[3, 2] -> conv kernel 3, 'same' padding 1
    W_SIZE = 32      # w_size (500 -> 32)
    FC_HIDDEN = 32   # FC_L_size=[64] -> 32
    OUT = 3          # out
    COUT = INC * NB_FILT

    key = jax.random.PRNGKey(0)
    kx, kxr, kp = jax.random.split(key, 3)
    x = jax.random.normal(kx, (B, INC, L), jnp.float32)        # NCL, like PyTorch
    xr = jax.random.normal(kxr, (B, 8), jnp.float32)           # unused (xr=False)
    params = init_params(kp, INC, COUT, K, W_SIZE, FC_HIDDEN, OUT)

    y = cnn_forward(x, xr, params, w_size=W_SIZE)
    jax.block_until_ready(y)
    assert y.shape == (B, OUT), y.shape

    ref = cnn_reference(x, params, w_size=W_SIZE)
    np.testing.assert_allclose(np.asarray(y), np.asarray(ref), rtol=5e-2, atol=2e-2)
    print("KERNEL_OK")
</pallas_src>

<mosaic_0001>
module attributes {stable_mosaic.version = 11 : i64} {
  func.func @cnn_fused_kernel(%arg0: i32, %arg1: memref<2x4x16xf32, #tpu.memory_space<vmem>>, %arg2: memref<12x128xbf16, #tpu.memory_space<vmem>>, %arg3: memref<1x128xf32, #tpu.memory_space<vmem>>, %arg4: memref<2x128x16xbf16, #tpu.memory_space<vmem>>, %arg5: memref<16x32xbf16, #tpu.memory_space<vmem>>, %arg6: memref<1x32xf32, #tpu.memory_space<vmem>>, %arg7: memref<32x3xbf16, #tpu.memory_space<vmem>>, %arg8: memref<1x3xf32, #tpu.memory_space<vmem>>, %arg9: memref<2x3xf32, #tpu.memory_space<vmem>>) attributes {dimension_semantics = [#tpu.dimension_semantics<parallel>], iteration_bounds = array<i64: 1>, scalar_prefetch = 0 : i64, scratch_operands = 0 : i64, tpu.core_type = #tpu.core_type<tc>, window_params = [{transform_indices = @transform_0, window_bounds = array<i64: 2, 4, 16>}, {pipeline_mode = #tpu.pipeline_mode<synchronous>, transform_indices = @transform_1, window_bounds = array<i64: 12, 128>}, {pipeline_mode = #tpu.pipeline_mode<synchronous>, transform_indices = @transform_2, window_bounds = array<i64: 1, 128>}, {pipeline_mode = #tpu.pipeline_mode<synchronous>, transform_indices = @transform_3, window_bounds = array<i64: 2, 128, 16>}, {pipeline_mode = #tpu.pipeline_mode<synchronous>, transform_indices = @transform_4, window_bounds = array<i64: 16, 32>}, {pipeline_mode = #tpu.pipeline_mode<synchronous>, transform_indices = @transform_5, window_bounds = array<i64: 1, 32>}, {pipeline_mode = #tpu.pipeline_mode<synchronous>, transform_indices = @transform_6, window_bounds = array<i64: 32, 3>}, {pipeline_mode = #tpu.pipeline_mode<synchronous>, transform_indices = @transform_7, window_bounds = array<i64: 1, 3>}, {transform_indices = @transform_8, window_bounds = array<i64: 2, 3>}]} {
    %c0 = arith.constant 0 : index
    %c0_0 = arith.constant 0 : index
    %c0_1 = arith.constant 0 : index
    %0 = vector.load %arg1[%c0, %c0_0, %c0_1] : memref<2x4x16xf32, #tpu.memory_space<vmem>>, vector<2x4x16xf32>
    %1 = tpu.transpose %0, [0, 2, 1] : vector<2x4x16xf32> -> vector<2x16x4xf32>
    %cst = arith.constant 0.000000e+00 : f32
    %2 = vector.broadcast %cst : f32 to vector<2x1x4xf32>
    %3 = tpu.concatenate %2, %1, %2 in 1 : vector<2x1x4xf32>, vector<2x16x4xf32>, vector<2x1x4xf32> -> vector<2x18x4xf32>
    %4 = vector.extract_strided_slice %3 {offsets = [0, 0, 0], sizes = [2, 16, 4], strides = [1, 1, 1]} : vector<2x18x4xf32> to vector<2x16x4xf32>
    %5 = vector.extract_strided_slice %3 {offsets = [0, 1, 0], sizes = [2, 16, 4], strides = [1, 1, 1]} : vector<2x18x4xf32> to vector<2x16x4xf32>
    %6 = vector.extract_strided_slice %3 {offsets = [0, 2, 0], sizes = [2, 16, 4], strides = [1, 1, 1]} : vector<2x18x4xf32> to vector<2x16x4xf32>
    %7 = tpu.concatenate %4, %5, %6 in 2 : vector<2x16x4xf32>, vector<2x16x4xf32>, vector<2x16x4xf32> -> vector<2x16x12xf32>
    %8 = vector.shape_cast %7 : vector<2x16x12xf32> to vector<32x12xf32>
    %9 = arith.truncf %8 : vector<32x12xf32> to vector<32x12xbf16>
    %c0_2 = arith.constant 0 : index
    %c0_3 = arith.constant 0 : index
    %10 = vector.load %arg2[%c0_2, %c0_3] : memref<12x128xbf16, #tpu.memory_space<vmem>>, vector<12x128xbf16>
    %cst_4 = arith.constant dense<0.000000e+00> : vector<32x128xf32>
    %11 = tpu.matmul %9, %10, %cst_4 {dimension_numbers = #tpu.dot_dimension_numbers<[1], [0], [0], [1], [0, 0, 1, 1], [], []>} : vector<32x12xbf16>, vector<12x128xbf16>, vector<32x128xf32> -> vector<32x128xf32>
    %c0_5 = arith.constant 0 : index
    %c0_6 = arith.constant 0 : index
    %12 = vector.load %arg3[%c0_5, %c0_6] : memref<1x128xf32, #tpu.memory_space<vmem>>, vector<1x128xf32>
    %13 = vector.broadcast %12 : vector<1x128xf32> to vector<32x128xf32>
    %14 = arith.addf %11, %13 : vector<32x128xf32>
    %cst_7 = arith.constant 0.000000e+00 : f32
    %15 = vector.broadcast %cst_7 : f32 to vector<32x128xf32>
    %16 = arith.maximumf %14, %15 : vector<32x128xf32>
    %17 = vector.shape_cast %16 : vector<32x128xf32> to vector<2x16x128xf32>
    %cst_8 = arith.constant dense<0xFF800000> : vector<2x128xf32>
    %18 = vector.multi_reduction <maximumf>, %17, %cst_8 [1] : vector<2x16x128xf32> to vector<2x128xf32>
    %19 = arith.truncf %18 : vector<2x128xf32> to vector<2x128xbf16>
    %c0_9 = arith.constant 0 : index
    %c0_10 = arith.constant 0 : index
    %c0_11 = arith.constant 0 : index
    %20 = vector.load %arg4[%c0_9, %c0_10, %c0_11] : memref<2x128x16xbf16, #tpu.memory_space<vmem>>, vector<1x128x16xbf16>
    %21 = vector.shape_cast %20 : vector<1x128x16xbf16> to vector<128x16xbf16>
    %cst_12 = arith.constant dense<0.000000e+00> : vector<2x16xf32>
    %22 = tpu.matmul %19, %21, %cst_12 {dimension_numbers = #tpu.dot_dimension_numbers<[1], [0], [0], [1], [0, 0, 1, 1], [], []>} : vector<2x128xbf16>, vector<128x16xbf16>, vector<2x16xf32> -> vector<2x16xf32>
    %c1 = arith.constant 1 : index
    %c0_13 = arith.constant 0 : index
    %c0_14 = arith.constant 0 : index
    %23 = vector.load %arg4[%c1, %c0_13, %c0_14] : memref<2x128x16xbf16, #tpu.memory_space<vmem>>, vector<1x128x16xbf16>
    %24 = vector.shape_cast %23 : vector<1x128x16xbf16> to vector<128x16xbf16>
    %cst_15 = arith.constant dense<0.000000e+00> : vector<2x16xf32>
    %25 = tpu.matmul %19, %24, %cst_15 {dimension_numbers = #tpu.dot_dimension_numbers<[1], [0], [0], [1], [0, 0, 1, 1], [], []>} : vector<2x128xbf16>, vector<128x16xbf16>, vector<2x16xf32> -> vector<2x16xf32>
    %26 = arith.maximumf %22, %25 : vector<2x16xf32>
    %27 = arith.truncf %26 : vector<2x16xf32> to vector<2x16xbf16>
    %c0_16 = arith.constant 0 : index
    %c0_17 = arith.constant 0 : index
    %28 = vector.load %arg5[%c0_16, %c0_17] : memref<16x32xbf16, #tpu.memory_space<vmem>>, vector<16x32xbf16>
    %cst_18 = arith.constant dense<0.000000e+00> : vector<2x32xf32>
    %29 = tpu.matmul %27, %28, %cst_18 {dimension_numbers = #tpu.dot_dimension_numbers<[1], [0], [0], [1], [0, 0, 1, 1], [], []>} : vector<2x16xbf16>, vector<16x32xbf16>, vector<2x32xf32> -> vector<2x32xf32>
    %c0_19 = arith.constant 0 : index
    %c0_20 = arith.constant 0 : index
    %30 = vector.load %arg6[%c0_19, %c0_20] : memref<1x32xf32, #tpu.memory_space<vmem>>, vector<1x32xf32>
    %31 = vector.broadcast %30 : vector<1x32xf32> to vector<2x32xf32>
    %32 = arith.addf %29, %31 : vector<2x32xf32>
    %cst_21 = arith.constant 0.000000e+00 : f32
    %33 = vector.broadcast %cst_21 : f32 to vector<2x32xf32>
    %34 = arith.maximumf %32, %33 : vector<2x32xf32>
    %35 = arith.truncf %34 : vector<2x32xf32> to vector<2x32xbf16>
    %c0_22 = arith.constant 0 : index
    %c0_23 = arith.constant 0 : index
    %36 = vector.load %arg7[%c0_22, %c0_23] : memref<32x3xbf16, #tpu.memory_space<vmem>>, vector<32x3xbf16>
    %cst_24 = arith.constant dense<0.000000e+00> : vector<2x3xf32>
    %37 = tpu.matmul %35, %36, %cst_24 {dimension_numbers = #tpu.dot_dimension_numbers<[1], [0], [0], [1], [0, 0, 1, 1], [], []>} : vector<2x32xbf16>, vector<32x3xbf16>, vector<2x3xf32> -> vector<2x3xf32>
    %c0_25 = arith.constant 0 : index
    %c0_26 = arith.constant 0 : index
    %38 = vector.load %arg8[%c0_25, %c0_26] : memref<1x3xf32, #tpu.memory_space<vmem>>, vector<1x3xf32>
    %39 = vector.broadcast %38 : vector<1x3xf32> to vector<2x3xf32>
    %40 = arith.addf %37, %39 : vector<2x3xf32>
    %c0_27 = arith.constant 0 : index
    %c0_28 = arith.constant 0 : index
    %41 = vector.load %arg9[%c0_27, %c0_28] : memref<2x3xf32, #tpu.memory_space<vmem>>, vector<2x3xf32>
    tpu.vector_store %arg9[%c0_27, %c0_28], %40 {strides = array<i32>} : memref<2x3xf32, #tpu.memory_space<vmem>>, vector<2x3xf32>,
    return
  }
  func.func @transform_0(%arg0: i32) -> (i32, i32, i32) {
    %c0_i32 = arith.constant 0 : i32
    %c0_i32_0 = arith.constant 0 : i32
    %c0_i32_1 = arith.constant 0 : i32
    return %arg0, %c0_i32, %c0_i32_0 : i32, i32, i32
  }
  func.func @transform_1(%arg0: i32) -> (i32, i32) {
    %c0_i32 = arith.constant 0 : i32
    %c0_i32_0 = arith.constant 0 : i32
    %c0_i32_1 = arith.constant 0 : i32
    return %c0_i32, %c0_i32_0 : i32, i32
  }
  func.func @transform_2(%arg0: i32) -> (i32, i32) {
    %c0_i32 = arith.constant 0 : i32
    %c0_i32_0 = arith.constant 0 : i32
    %c0_i32_1 = arith.constant 0 : i32
    return %c0_i32, %c0_i32_0 : i32, i32
  }
  func.func @transform_3(%arg0: i32) -> (i32, i32, i32) {
    %c0_i32 = arith.constant 0 : i32
    %c0_i32_0 = arith.constant 0 : i32
    %c0_i32_1 = arith.constant 0 : i32
    %c0_i32_2 = arith.constant 0 : i32
    return %c0_i32, %c0_i32_0, %c0_i32_1 : i32, i32, i32
  }
  func.func @transform_4(%arg0: i32) -> (i32, i32) {
    %c0_i32 = arith.constant 0 : i32
    %c0_i32_0 = arith.constant 0 : i32
    %c0_i32_1 = arith.constant 0 : i32
    return %c0_i32, %c0_i32_0 : i32, i32
  }
  func.func @transform_5(%arg0: i32) -> (i32, i32) {
    %c0_i32 = arith.constant 0 : i32
    %c0_i32_0 = arith.constant 0 : i32
    %c0_i32_1 = arith.constant 0 : i32
    return %c0_i32, %c0_i32_0 : i32, i32
  }
  func.func @transform_6(%arg0: i32) -> (i32, i32) {
    %c0_i32 = arith.constant 0 : i32
    %c0_i32_0 = arith.constant 0 : i32
    %c0_i32_1 = arith.constant 0 : i32
    return %c0_i32, %c0_i32_0 : i32, i32
  }
  func.func @transform_7(%arg0: i32) -> (i32, i32) {
    %c0_i32 = arith.constant 0 : i32
    %c0_i32_0 = arith.constant 0 : i32
    %c0_i32_1 = arith.constant 0 : i32
    return %c0_i32, %c0_i32_0 : i32, i32
  }
  func.func @transform_8(%arg0: i32) -> (i32, i32) {
    %c0_i32 = arith.constant 0 : i32
    %c0_i32_0 = arith.constant 0 : i32
    return %arg0, %c0_i32 : i32, i32
  }
}

</mosaic_0001>

<llo_original>
// kernel: tpu_custom_call.1
$region0: #{tpu_custom_call.1}
  #allocation0 [shape = 'u32[]', space=smem, size = 0x4, offset = 0x4, fixed_abs, tag = 'smem constant byte address 0x4 - core index']
  #allocation1 [shape = 'u32[144,128]{1,0:T(1,128)}', space=vmem, size = 0x12000, scoped, tag = 'internal scratch']
  %s0 = inlined_call_operand.vmem [shape: f32[2,4,16], index: 0, kind: input, shape index: {}]
  %s1 = inlined_call_operand.vmem [shape: bf16[12,128], index: 1, kind: input, shape index: {}]
  %s2 = inlined_call_operand.vmem [shape: f32[1,128], index: 2, kind: input, shape index: {}]
  %s3 = inlined_call_operand.vmem [shape: bf16[2,128,16], index: 3, kind: input, shape index: {}]
  %s4 = inlined_call_operand.vmem [shape: bf16[16,32], index: 4, kind: input, shape index: {}]
  %s5 = inlined_call_operand.vmem [shape: f32[1,32], index: 5, kind: input, shape index: {}]
  %s6 = inlined_call_operand.vmem [shape: bf16[32,3], index: 6, kind: input, shape index: {}]
  %s7 = inlined_call_operand.vmem [shape: f32[1,3], index: 7, kind: input, shape index: {}]
  %s8 = inlined_call_operand.hbm [shape: f32[2,3], index: 8, kind: output, shape index: {}]
  %s9 = sld [smem:[#allocation0]]
  $region42: #{tpu_custom_call.1} parent=0
    _
  %s11 = ssub.s32 1, %s9
  %s12 = scalar_select 0, %s11, %s9
  $region1: #{tpu_custom_call.1} parent=0
    #allocation2 [shape = 'u8[1024]{0}', space=vmem, size = 0x400, scoped, tag = 'output window, operand 0, single buffered']
    #allocation3 [shape = 's32[1]{0}', space=sflag, size = 0x4, scoped, tag = 'scoped memory for tpu_custom_call.1']
    %13 = vsyncpa [#allocation3], 0
    // Predicated region
    $region2: #{tpu_custom_call.1} parent=1 // pred_check
      _
    $region3: #{tpu_custom_call.1} parent=1 // pred_check_branch
      %15 = sbr.rel (0) target = $region5
    $region4: #{tpu_custom_call.1} parent=1 // pred_region
      _
    $region5: #{tpu_custom_call.1} parent=1 // pred_fallthru
      _
    // Predicated region
    $region6: #{tpu_custom_call.1} parent=1 // pred_check
      _
    $region7: #{tpu_custom_call.1} parent=1 // pred_check_branch
      %17 = sbr.rel (0) target = $region9
    $region8: #{tpu_custom_call.1} parent=1 // pred_region
      _
    $region9: #{tpu_custom_call.1} parent=1 // pred_fallthru
      _
    // Predicated region
    $region10: #{tpu_custom_call.1} parent=1 // pred_check
      _
    $region11: #{tpu_custom_call.1} parent=1 // pred_check_branch
      %19 = sbr.rel (0) target = $region13
    $region12: #{tpu_custom_call.1} parent=1 // pred_region
      _
    $region13: #{tpu_custom_call.1} parent=1 // pred_fallthru
      _
    // Predicated region
    $region14: #{tpu_custom_call.1} parent=1 // pred_check
      _
    $region15: #{tpu_custom_call.1} parent=1 // pred_check_branch
      %21 = sbr.rel (0) target = $region17
    $region16: #{tpu_custom_call.1} parent=1 // pred_region
      _
    $region17: #{tpu_custom_call.1} parent=1 // pred_fallthru
      _
    // Predicated region
    $region18: #{tpu_custom_call.1} parent=1 // pred_check
      _
    $region19: #{tpu_custom_call.1} parent=1 // pred_check_branch
      %23 = sbr.rel (0) target = $region21
    $region20: #{tpu_custom_call.1} parent=1 // pred_region
      _
    $region21: #{tpu_custom_call.1} parent=1 // pred_fallthru
      _
    // Predicated region
    $region22: #{tpu_custom_call.1} parent=1 // pred_check
      _
    $region23: #{tpu_custom_call.1} parent=1 // pred_check_branch
      %25 = sbr.rel (0) target = $region25
    $region24: #{tpu_custom_call.1} parent=1 // pred_region
      _
    $region25: #{tpu_custom_call.1} parent=1 // pred_fallthru
      _
    // Predicated region
    $region26: #{tpu_custom_call.1} parent=1 // pred_check
      _
    $region27: #{tpu_custom_call.1} parent=1 // pred_check_branch
      %27 = sbr.rel (0) target = $region29
    $region28: #{tpu_custom_call.1} parent=1 // pred_region
      _
    $region29: #{tpu_custom_call.1} parent=1 // pred_fallthru
      _
    // Predicated region
    $region30: #{tpu_custom_call.1} parent=1 // pred_check
      _
    $region31: #{tpu_custom_call.1} parent=1 // pred_check_branch
      %29 = sbr.rel (0) target = $region33
    $region32: #{tpu_custom_call.1} parent=1 // pred_region
      _
    $region33: #{tpu_custom_call.1} parent=1 // pred_fallthru
      _
    %v31 = vld [vmem:[%s0] sm:$0xf]
    %v32 = vld [vmem:[%s0 + $0x4] sm:$0xf]
    %33 = vxpose.xlu0.b32.start [1/16] %v31, 128
    %34 = vxpose.xlu0.b32.cont [2/16] 0.0, 128
    %35 = vxpose.xlu0.b32.cont [3/16] 0.0, 128
    %36 = vxpose.xlu0.b32.cont [4/16] 0.0, 128
    %37 = vxpose.xlu0.b32.cont [5/16] 0.0, 128
    %38 = vxpose.xlu0.b32.cont [6/16] 0.0, 128
    %39 = vxpose.xlu0.b32.cont [7/16] 0.0, 128
    %40 = vxpose.xlu0.b32.cont [8/16] 0.0, 128
    %41 = vxpose.xlu0.b32.cont [9/16] 0.0, 128
    %42 = vxpose.xlu0.b32.cont [10/16] 0.0, 128
    %43 = vxpose.xlu0.b32.cont [11/16] 0.0, 128
    %44 = vxpose.xlu0.b32.cont [12/16] 0.0, 128
    %45 = vxpose.xlu0.b32.cont [13/16] 0.0, 128
    %46 = vxpose.xlu0.b32.cont [14/16] 0.0, 128
    %47 = vxpose.xlu0.b32.cont [15/16] 0.0, 128
    %48 = vxpose.xlu0.b32.end [16/16] 0.0, 128
    %v49 = vpop.trf.xlu0
    %v50 = vpop.trf.xlu0
    %v51 = vpop.trf.xlu0
    %v52 = vpop.trf.xlu0
    %v53 = vpop.trf.xlu0
    %v54 = vpop.trf.xlu0
    %v55 = vpop.trf.xlu0
    %v56 = vpop.trf.xlu0
    %v57 = vpop.trf.xlu0
    %v58 = vpop.trf.xlu0
    %v59 = vpop.trf.xlu0
    %v60 = vpop.trf.xlu0
    %v61 = vpop.trf.xlu0
    %v62 = vpop.trf.xlu0
    %v63 = vpop.trf.xlu0
    %v64 = vpop.trf.xlu0
    %65 = vxpose.xlu0.b32.start [1/16] %v32, 128
    %66 = vxpose.xlu0.b32.cont [2/16] 0.0, 128
    %67 = vxpose.xlu0.b32.cont [3/16] 0.0, 128
    %68 = vxpose.xlu0.b32.cont [4/16] 0.0, 128
    %69 = vxpose.xlu0.b32.cont [5/16] 0.0, 128
    %70 = vxpose.xlu0.b32.cont [6/16] 0.0, 128
    %71 = vxpose.xlu0.b32.cont [7/16] 0.0, 128
    %72 = vxpose.xlu0.b32.cont [8/16] 0.0, 128
    %73 = vxpose.xlu0.b32.cont [9/16] 0.0, 128
    %74 = vxpose.xlu0.b32.cont [10/16] 0.0, 128
    %75 = vxpose.xlu0.b32.cont [11/16] 0.0, 128
    %76 = vxpose.xlu0.b32.cont [12/16] 0.0, 128
    %77 = vxpose.xlu0.b32.cont [13/16] 0.0, 128
    %78 = vxpose.xlu0.b32.cont [14/16] 0.0, 128
    %79 = vxpose.xlu0.b32.cont [15/16] 0.0, 128
    %80 = vxpose.xlu0.b32.end [16/16] 0.0, 128
    %v81 = vpop.trf.xlu0
    %v82 = vpop.trf.xlu0
    %v83 = vpop.trf.xlu0
    %v84 = vpop.trf.xlu0
    %v85 = vpop.trf.xlu0
    %v86 = vpop.trf.xlu0
    %v87 = vpop.trf.xlu0
    %v88 = vpop.trf.xlu0
    %v89 = vpop.trf.xlu0
    %v90 = vpop.trf.xlu0
    %v91 = vpop.trf.xlu0
    %v92 = vpop.trf.xlu0
    %v93 = vpop.trf.xlu0
    %v94 = vpop.trf.xlu0
    %v95 = vpop.trf.xlu0
    %v96 = vpop.trf.xlu0
    %vm101 = vcmask 1040384
    %v102 = vrot.slane %v49, 7
    %v103 = vrot.slane %v50, 7
    %v104 = vsel %vm101, %v102, %v103
    %v105 = vrot.slane %v81, 7
    %v106 = vrot.slane %v82, 7
    %v107 = vsel %vm101, %v105, %v106
    %v114 = vsel %vm101, 0.0, %v102
    %v115 = vsel %vm101, 0.0, %v105
    %v116 = vsel %vm101, %v103, 0.0
    %v117 = vsel %vm101, %v106, 0.0
    %vm122 = vcmask 1046528
    %v123 = vrot.slane %v114, 1
    %v124 = vrot.slane %v104, 1
    %v125 = vsel %vm122, %v123, %v124
    %v126 = vrot.slane %v116, 1
    %v127 = vsel %vm122, %v124, %v126
    %v128 = vrot.slane %v115, 1
    %v129 = vrot.slane %v107, 1
    %v130 = vsel %vm122, %v128, %v129
    %v131 = vrot.slane %v117, 1
    %v132 = vsel %vm122, %v129, %v131
    %133 = vrot.lane.b32.xlu0 %v125, 4
    %v134 = vpop.permute.xlu0 %133
    %135 = vrot.lane.b32.xlu0 %v127, 4
    %v136 = vpop.permute.xlu0 %135
    %137 = vrot.lane.b32.xlu0 %v130, 4
    %v138 = vpop.permute.xlu0 %137
    %139 = vrot.lane.b32.xlu0 %v132, 4
    %v140 = vpop.permute.xlu0 %139
    %vm145 = vcmask 1045504
    %v146 = vrot.slane %v114, 2
    %v147 = vrot.slane %v104, 2
    %v148 = vsel %vm145, %v146, %v147
    %v149 = vrot.slane %v116, 2
    %v150 = vsel %vm145, %v147, %v149
    %v151 = vrot.slane %v115, 2
    %v152 = vrot.slane %v107, 2
    %v153 = vsel %vm145, %v151, %v152
    %v154 = vrot.slane %v117, 2
    %v155 = vsel %vm145, %v152, %v154
    %156 = vrot.lane.b32.xlu0 %v148, 8
    %v157 = vpop.permute.xlu0 %156
    %158 = vrot.lane.b32.xlu0 %v150, 8
    %v159 = vpop.permute.xlu0 %158
    %160 = vrot.lane.b32.xlu0 %v153, 8
    %v161 = vpop.permute.xlu0 %160
    %162 = vrot.lane.b32.xlu0 %v155, 8
    %v163 = vpop.permute.xlu0 %162
    %vm168 = vcmask 31744
    %v169 = vsel %vm168, %v114, %v134
    %v170 = vsel %vm168, %v104, %v136
    %v171 = vsel %vm168, %v115, %v138
    %v172 = vsel %vm168, %v107, %v140
    %vm173 = vcmask 64512
    %v174 = vsel %vm173, %v169, %v157
    %v175 = vsel %vm173, %v170, %v159
    %v176 = vsel %vm173, %v171, %v161
    %v177 = vsel %vm173, %v172, %v163
    %v178 = vpack.c.bf16 %v175, %v174
    %v179 = vpack.c.bf16 %v177, %v176
    %v180 = vld [vmem:[%s1] sm:$0xf]
    %v181 = vld [vmem:[%s1 + $0x4] sm:$0x3]
    %v182 = vld [vmem:[%s2] sm:$0x1]
    %v184 = vlaneseq
    %v185 = vshrl.u32 %v184, 7
    %v186 = vsub.s32 0, %v185
    %v187 = vrot.slane %v182, %v186
    %v191 = vunpack.c.l.b16 %v180
    %v192 = vunpack.c.l.b16 %v181
    %v193 = vpack.c.b16 %v192, %v191
    %vm194 = vcmask 97280
    %v196 = vsel %vm194, %v178, 0
    %v199 = vsel %vm194, %v179, 0
    %v202 = vsel %vm145, %v193, 0
    %204 = vmatprep.subr.bf16.mxu0 0
    %205 = vmatpush1.bf16.msra.mxu0 %v202
    %206 = vmatprep.subr.bf16.mxu0 0
    %207 = vmatpush1.bf16.msra.mxu0 0
    %208 = vmatprep.subr.bf16.mxu0 0
    %209 = vmatpush1.bf16.msra.mxu0 0
    %210 = vmatprep.subr.bf16.mxu0 0
    %211 = vmatpush1.bf16.msra.mxu0 0
    %212 = vmatprep.subr.bf16.mxu0 0
    %213 = vmatpush1.bf16.msra.mxu0 0
    %214 = vmatprep.subr.bf16.mxu0 0
    %215 = vmatpush1.bf16.msra.mxu0 0
    %216 = vmatprep.subr.bf16.mxu0 0
    %217 = vmatpush1.bf16.msra.mxu0 0
    %218 = vmatprep.subr.bf16.mxu0 0
    %219 = vmatpush1.bf16.msra.mxu0 0
    %220 = vmatprep.subr.bf16.mxu0 0
    %221 = vmatpush1.bf16.msra.mxu0 0
    %222 = vmatprep.subr.bf16.mxu0 0
    %223 = vmatpush1.bf16.msra.mxu0 0
    %224 = vmatprep.subr.bf16.mxu0 0
    %225 = vmatpush1.bf16.msra.mxu0 0
    %226 = vmatprep.subr.bf16.mxu0 0
    %227 = vmatpush1.bf16.msra.mxu0 0
    %228 = vmatprep.subr.bf16.mxu0 0
    %229 = vmatpush1.bf16.msra.mxu0 0
    %230 = vmatprep.subr.bf16.mxu0 0
    %231 = vmatpush1.bf16.msra.mxu0 0
    %232 = vmatprep.subr.bf16.mxu0 0
    %233 = vmatpush1.bf16.msra.mxu0 0
    %234 = vmatprep.subr.bf16.mxu0 0
    %235 = vmatpush1.bf16.msra.mxu0 0
    %236 = vmatprep.mubr.bf16.mxu0 0
    %237 = vmatmul.mubr.bf16.gmra.mrb[0].mxu0 %v196
    %v238 = vpop.f32.mrb[0].mxu0
    %v239 = vadd.f32 %v187, %v238
    %v240 = vpop.f32.mrb[0].mxu0
    %v241 = vpop.f32.mrb[0].mxu0
    %v242 = vadd.f32 %v187, %v241
    %v243 = vpop.f32.mrb[0].mxu0
    %244 = vmatprep.mubr.bf16.mxu0 0
    %245 = vmatmul.mubr.bf16.gmra.mrb[0].mxu0 %v199
    %v246 = vpop.f32.mrb[0].mxu0
    %v247 = vadd.f32 %v187, %v246
    %v248 = vpop.f32.mrb[0].mxu0
    %v249 = vpop.f32.mrb[0].mxu0
    %v250 = vadd.f32 %v187, %v249
    %v251 = vpop.f32.mrb[0].mxu0
    %252 = vdwg.mxu0
    %v253 = vmax.f32 %v239, 0.0
    %v254 = vmax.f32 %v242, 0.0
    %v255 = vmax.f32 %v247, 0.0
    %v256 = vmax.f32 %v250, 0.0
    %v257 = vmax.f32 %v253, %v254
    %v258 = vrot.slane %v257, 4
    %v259 = vmax.f32 %v257, %v258
    %v260 = vrot.slane %v259, 2
    %v261 = vmax.f32 %v259, %v260
    %v262 = vrot.slane %v261, 1
    %v263 = vmax.f32 %v261, %v262
    %v264 = vmax.f32 %v255, %v256
    %v265 = vrot.slane %v264, 4
    %v266 = vmax.f32 %v264, %v265
    %v267 = vrot.slane %v266, 2
    %v268 = vmax.f32 %v266, %v267
    %v269 = vrot.slane %v268, 1
    %v270 = vmax.f32 %v268, %v269
    %v271 = vpack.c.bf16 %v263, %v263
    %v272 = vpack.c.bf16 %v270, %v270
    %v273 = vld [vmem:[%s3] sm:$0xf]
    %v274 = vld [vmem:[%s3 + $0x4] sm:$0xf]
    %v275 = vld [vmem:[%s3 + $0x8] sm:$0xf]
    %v276 = vld [vmem:[%s3 + $0xc] sm:$0xf]
    %v277 = vld [vmem:[%s3 + $0x10] sm:$0xf]
    %v278 = vld [vmem:[%s3 + $0x14] sm:$0xf]
    %v279 = vld [vmem:[%s3 + $0x18] sm:$0xf]
    %v280 = vld [vmem:[%s3 + $0x1c] sm:$0xf]
    %v281 = vld [vmem:[%s3 + $0x20] sm:$0xf]
    %v282 = vld [vmem:[%s3 + $0x24] sm:$0xf]
    %v283 = vld [vmem:[%s3 + $0x28] sm:$0xf]
    %v284 = vld [vmem:[%s3 + $0x2c] sm:$0xf]
    %v285 = vld [vmem:[%s3 + $0x30] sm:$0xf]
    %v286 = vld [vmem:[%s3 + $0x34] sm:$0xf]
    %v287 = vld [vmem:[%s3 + $0x38] sm:$0xf]
    %v288 = vld [vmem:[%s3 + $0x3c] sm:$0xf]
    %v291 = vunpack.c.l.b16 %v271
    %v292 = vunpack.c.l.b16 %v272
    %vm293 = vcmask 1041409
    %v294 = vsel %vm293, %v292, %v291
    %v295 = vpack.c.b16 %v294, %v294
    %v313 = vunpack.c.l.b16 %v273
    %v314 = vunpack.c.l.b16 %v274
    %v315 = vunpack.c.l.b16 %v275
    %v316 = vunpack.c.l.b16 %v276
    %v317 = vunpack.c.l.b16 %v277
    %v318 = vunpack.c.l.b16 %v278
    %v319 = vunpack.c.l.b16 %v279
    %v320 = vunpack.c.l.b16 %v280
    %v321 = vunpack.c.l.b16 %v281
    %v322 = vunpack.c.l.b16 %v282
    %v323 = vunpack.c.l.b16 %v283
    %v324 = vunpack.c.l.b16 %v284
    %v325 = vunpack.c.l.b16 %v285
    %v326 = vunpack.c.l.b16 %v286
    %v327 = vunpack.c.l.b16 %v287
    %v328 = vunpack.c.l.b16 %v288
    %v329 = vpack.c.b16 %v314, %v313
    %v330 = vpack.c.b16 %v316, %v315
    %v331 = vpack.c.b16 %v318, %v317
    %v332 = vpack.c.b16 %v320, %v319
    %v333 = vpack.c.b16 %v322, %v321
    %v334 = vpack.c.b16 %v324, %v323
    %v335 = vpack.c.b16 %v326, %v325
    %v336 = vpack.c.b16 %v328, %v327
    %345 = vmatprep.subr.bf16.mxu0 0
    %346 = vmatpush1.bf16.msra.mxu0 %v329
    %347 = vmatprep.subr.bf16.mxu0 0
    %348 = vmatpush1.bf16.msra.mxu0 %v330
    %349 = vmatprep.subr.bf16.mxu0 0
    %350 = vmatpush1.bf16.msra.mxu0 %v331
    %351 = vmatprep.subr.bf16.mxu0 0
    %352 = vmatpush1.bf16.msra.mxu0 %v332
    %353 = vmatprep.subr.bf16.mxu0 0
    %354 = vmatpush1.bf16.msra.mxu0 %v333
    %355 = vmatprep.subr.bf16.mxu0 0
    %356 = vmatpush1.bf16.msra.mxu0 %v334
    %357 = vmatprep.subr.bf16.mxu0 0
    %358 = vmatpush1.bf16.msra.mxu0 %v335
    %359 = vmatprep.subr.bf16.mxu0 0
    %360 = vmatpush1.bf16.msra.mxu0 %v336
    %361 = vmatprep.subr.bf16.mxu0 0
    %362 = vmatpush1.bf16.msra.mxu0 0
    %363 = vmatprep.subr.bf16.mxu0 0
    %364 = vmatpush1.bf16.msra.mxu0 0
    %365 = vmatprep.subr.bf16.mxu0 0
    %366 = vmatpush1.bf16.msra.mxu0 0
    %367 = vmatprep.subr.bf16.mxu0 0
    %368 = vmatpush1.bf16.msra.mxu0 0
    %369 = vmatprep.subr.bf16.mxu0 0
    %370 = vmatpush1.bf16.msra.mxu0 0
    %371 = vmatprep.subr.bf16.mxu0 0
    %372 = vmatpush1.bf16.msra.mxu0 0
    %373 = vmatprep.subr.bf16.mxu0 0
    %374 = vmatpush1.bf16.msra.mxu0 0
    %375 = vmatprep.subr.bf16.mxu0 0
    %376 = vmatpush1.bf16.msra.mxu0 0
    %377 = vmatprep.mubr.bf16.mxu0 0
    %378 = vmatmul.mubr.bf16.gmra.mrb[0].mxu0 %v295
    %v379 = vpop.f32.mrb[0].mxu0
    %v380 = vadd.f32 0.0, %v379
    %v381 = vpop.f32.mrb[0].mxu0
    %v382 = vpop.f32.mrb[0].mxu0
    %v383 = vpop.f32.mrb[0].mxu0
    %384 = vdwg.mxu0
    %s385 = scalar_lea.vmem %s3, 64
    %v386 = vld [vmem:[%s385] sm:$0xf]
    %v387 = vld [vmem:[%s385 + $0x4] sm:$0xf]
    %v388 = vld [vmem:[%s385 + $0x8] sm:$0xf]
    %v389 = vld [vmem:[%s385 + $0xc] sm:$0xf]
    %v390 = vld [vmem:[%s385 + $0x10] sm:$0xf]
    %v391 = vld [vmem:[%s385 + $0x14] sm:$0xf]
    %v392 = vld [vmem:[%s385 + $0x18] sm:$0xf]
    %v393 = vld [vmem:[%s385 + $0x1c] sm:$0xf]
    %v394 = vld [vmem:[%s385 + $0x20] sm:$0xf]
    %v395 = vld [vmem:[%s385 + $0x24] sm:$0xf]
    %v396 = vld [vmem:[%s385 + $0x28] sm:$0xf]
    %v397 = vld [vmem:[%s385 + $0x2c] sm:$0xf]
    %v398 = vld [vmem:[%s385 + $0x30] sm:$0xf]
    %v399 = vld [vmem:[%s385 + $0x34] sm:$0xf]
    %v400 = vld [vmem:[%s385 + $0x38] sm:$0xf]
    %v401 = vld [vmem:[%s385 + $0x3c] sm:$0xf]
    %v418 = vunpack.c.l.b16 %v386
    %v419 = vunpack.c.l.b16 %v387
    %v420 = vunpack.c.l.b16 %v388
    %v421 = vunpack.c.l.b16 %v389
    %v422 = vunpack.c.l.b16 %v390
    %v423 = vunpack.c.l.b16 %v391
    %v424 = vunpack.c.l.b16 %v392
    %v425 = vunpack.c.l.b16 %v393
    %v426 = vunpack.c.l.b16 %v394
    %v427 = vunpack.c.l.b16 %v395
    %v428 = vunpack.c.l.b16 %v396
    %v429 = vunpack.c.l.b16 %v397
    %v430 = vunpack.c.l.b16 %v398
    %v431 = vunpack.c.l.b16 %v399
    %v432 = vunpack.c.l.b16 %v400
    %v433 = vunpack.c.l.b16 %v401
    %v434 = vpack.c.b16 %v419, %v418
    %v435 = vpack.c.b16 %v421, %v420
    %v436 = vpack.c.b16 %v423, %v422
    %v437 = vpack.c.b16 %v425, %v424
    %v438 = vpack.c.b16 %v427, %v426
    %v439 = vpack.c.b16 %v429, %v428
    %v440 = vpack.c.b16 %v431, %v430
    %v441 = vpack.c.b16 %v433, %v432
    %450 = vmatprep.subr.bf16.mxu0 0
    %451 = vmatpush1.bf16.msra.mxu0 %v434
    %452 = vmatprep.subr.bf16.mxu0 0
    %453 = vmatpush1.bf16.msra.mxu0 %v435
    %454 = vmatprep.subr.bf16.mxu0 0
    %455 = vmatpush1.bf16.msra.mxu0 %v436
    %456 = vmatprep.subr.bf16.mxu0 0
    %457 = vmatpush1.bf16.msra.mxu0 %v437
    %458 = vmatprep.subr.bf16.mxu0 0
    %459 = vmatpush1.bf16.msra.mxu0 %v438
    %460 = vmatprep.subr.bf16.mxu0 0
    %461 = vmatpush1.bf16.msra.mxu0 %v439
    %462 = vmatprep.subr.bf16.mxu0 0
    %463 = vmatpush1.bf16.msra.mxu0 %v440
    %464 = vmatprep.subr.bf16.mxu0 0
    %465 = vmatpush1.bf16.msra.mxu0 %v441
    %466 = vmatprep.subr.bf16.mxu0 0
    %467 = vmatpush1.bf16.msra.mxu0 0
    %468 = vmatprep.subr.bf16.mxu0 0
    %469 = vmatpush1.bf16.msra.mxu0 0
    %470 = vmatprep.subr.bf16.mxu0 0
    %471 = vmatpush1.bf16.msra.mxu0 0
    %472 = vmatprep.subr.bf16.mxu0 0
    %473 = vmatpush1.bf16.msra.mxu0 0
    %474 = vmatprep.subr.bf16.mxu0 0
    %475 = vmatpush1.bf16.msra.mxu0 0
    %476 = vmatprep.subr.bf16.mxu0 0
    %477 = vmatpush1.bf16.msra.mxu0 0
    %478 = vmatprep.subr.bf16.mxu0 0
    %479 = vmatpush1.bf16.msra.mxu0 0
    %480 = vmatprep.subr.bf16.mxu0 0
    %481 = vmatpush1.bf16.msra.mxu0 0
    %482 = vmatprep.mubr.bf16.mxu0 0
    %483 = vmatmul.mubr.bf16.gmra.mrb[0].mxu0 %v295
    %v484 = vpop.f32.mrb[0].mxu0
    %v485 = vadd.f32 0.0, %v484
    %v486 = vpop.f32.mrb[0].mxu0
    %v487 = vpop.f32.mrb[0].mxu0
    %v488 = vpop.f32.mrb[0].mxu0
    %489 = vdwg.mxu0
    %v490 = vmax.f32 %v380, %v485
    %v491 = vpack.c.bf16 %v490, %v490
    %v492 = vld [vmem:[%s4] sm:$0xf]
    %v493 = vld [vmem:[%s4 + $0x4] sm:$0xf]
    %v494 = vld [vmem:[%s5] sm:$0x1]
    %v496 = vlaneseq
    %v497 = vshrl.u32 %v496, 7
    %v498 = vsub.s32 0, %v497
    %v499 = vrot.slane %v494, %v498
    %v503 = vunpack.c.l.b16 %v492
    %v504 = vunpack.c.l.b16 %v493
    %v505 = vpack.c.b16 %v504, %v503
    %vm507 = vcmask 130048
    %v509 = vsel %vm507, %v491, 0
    %511 = vmatprep.subr.bf16.mxu0 0
    %512 = vmatpush1.bf16.msra.mxu0 %v505
    %513 = vmatprep.subr.bf16.mxu0 0
    %514 = vmatpush1.bf16.msra.mxu0 0
    %515 = vmatprep.subr.bf16.mxu0 0
    %516 = vmatpush1.bf16.msra.mxu0 0
    %517 = vmatprep.subr.bf16.mxu0 0
    %518 = vmatpush1.bf16.msra.mxu0 0
    %519 = vmatprep.subr.bf16.mxu0 0
    %520 = vmatpush1.bf16.msra.mxu0 0
    %521 = vmatprep.subr.bf16.mxu0 0
    %522 = vmatpush1.bf16.msra.mxu0 0
    %523 = vmatprep.subr.bf16.mxu0 0
    %524 = vmatpush1.bf16.msra.mxu0 0
    %525 = vmatprep.subr.bf16.mxu0 0
    %526 = vmatpush1.bf16.msra.mxu0 0
    %527 = vmatprep.subr.bf16.mxu0 0
    %528 = vmatpush1.bf16.msra.mxu0 0
    %529 = vmatprep.subr.bf16.mxu0 0
    %530 = vmatpush1.bf16.msra.mxu0 0
    %531 = vmatprep.subr.bf16.mxu0 0
    %532 = vmatpush1.bf16.msra.mxu0 0
    %533 = vmatprep.subr.bf16.mxu0 0
    %534 = vmatpush1.bf16.msra.mxu0 0
    %535 = vmatprep.subr.bf16.mxu0 0
    %536 = vmatpush1.bf16.msra.mxu0 0
    %537 = vmatprep.subr.bf16.mxu0 0
    %538 = vmatpush1.bf16.msra.mxu0 0
    %539 = vmatprep.subr.bf16.mxu0 0
    %540 = vmatpush1.bf16.msra.mxu0 0
    %541 = vmatprep.subr.bf16.mxu0 0
    %542 = vmatpush1.bf16.msra.mxu0 0
    %543 = vmatprep.mubr.bf16.mxu0 0
    %544 = vmatmul.mubr.bf16.gmra.mrb[0].mxu0 %v509
    %v545 = vpop.f32.mrb[0].mxu0
    %v546 = vadd.f32 %v499, %v545
    %v547 = vpop.f32.mrb[0].mxu0
    %v548 = vpop.f32.mrb[0].mxu0
    %v549 = vpop.f32.mrb[0].mxu0
    %550 = vdwg.mxu0
    %v551 = vmax.f32 %v546, 0.0
    %v552 = vpack.c.bf16 %v551, %v551
    %v553 = vld [vmem:[%s6] sm:$0xf]
    %v554 = vld [vmem:[%s6 + $0x4] sm:$0xf]
    %v555 = vld [vmem:[%s6 + $0x8] sm:$0xf]
    %v556 = vld [vmem:[%s6 + $0xc] sm:$0xf]
    %v557 = vld [vmem:[%s7] sm:$0x1]
    %v559 = vlaneseq
    %v560 = vshrl.u32 %v559, 7
    %v561 = vsub.s32 0, %v560
    %v562 = vrot.slane %v557, %v561
    %v568 = vunpack.c.l.b16 %v553
    %v569 = vunpack.c.l.b16 %v554
    %v570 = vunpack.c.l.b16 %v555
    %v571 = vunpack.c.l.b16 %v556
    %v572 = vpack.c.b16 %v569, %v568
    %v573 = vpack.c.b16 %v571, %v570
    %vm576 = vcmask 261120
    %v578 = vsel %vm576, %v552, 0
    %580 = vmatprep.subr.bf16.mxu0 0
    %581 = vmatpush1.bf16.msra.mxu0 %v572
    %582 = vmatprep.subr.bf16.mxu0 0
    %583 = vmatpush1.bf16.msra.mxu0 %v573
    %584 = vmatprep.subr.bf16.mxu0 0
    %585 = vmatpush1.bf16.msra.mxu0 0
    %586 = vmatprep.subr.bf16.mxu0 0
    %587 = vmatpush1.bf16.msra.mxu0 0
    %588 = vmatprep.subr.bf16.mxu0 0
    %589 = vmatpush1.bf16.msra.mxu0 0
    %590 = vmatprep.subr.bf16.mxu0 0
    %591 = vmatpush1.bf16.msra.mxu0 0
    %592 = vmatprep.subr.bf16.mxu0 0
    %593 = vmatpush1.bf16.msra.mxu0 0
    %594 = vmatprep.subr.bf16.mxu0 0
    %595 = vmatpush1.bf16.msra.mxu0 0
    %596 = vmatprep.subr.bf16.mxu0 0
    %597 = vmatpush1.bf16.msra.mxu0 0
    %598 = vmatprep.subr.bf16.mxu0 0
    %599 = vmatpush1.bf16.msra.mxu0 0
    %600 = vmatprep.subr.bf16.mxu0 0
    %601 = vmatpush1.bf16.msra.mxu0 0
    %602 = vmatprep.subr.bf16.mxu0 0
    %603 = vmatpush1.bf16.msra.mxu0 0
    %604 = vmatprep.subr.bf16.mxu0 0
    %605 = vmatpush1.bf16.msra.mxu0 0
    %606 = vmatprep.subr.bf16.mxu0 0
    %607 = vmatpush1.bf16.msra.mxu0 0
    %608 = vmatprep.subr.bf16.mxu0 0
    %609 = vmatpush1.bf16.msra.mxu0 0
    %610 = vmatprep.subr.bf16.mxu0 0
    %611 = vmatpush1.bf16.msra.mxu0 0
    %612 = vmatprep.mubr.bf16.mxu0 0
    %613 = vmatmul.mubr.bf16.gmra.mrb[0].mxu0 %v578
    %v614 = vpop.f32.mrb[0].mxu0
    %v615 = vadd.f32 %v562, %v614
    %v616 = vpop.f32.mrb[0].mxu0
    %v617 = vpop.f32.mrb[0].mxu0
    %v618 = vpop.f32.mrb[0].mxu0
    %619 = vdwg.mxu0
    %vm620 = vcmask 17408
    %621 = vst.msk [vmem:[#allocation2] sm:$0x3] %vm620, %v615
    // Predicated region
    $region34: #{tpu_custom_call.1} parent=1 // pred_check
      _
    $region35: #{tpu_custom_call.1} parent=1 // pred_check_branch
      %623 = sbr.rel (0) target = $region37
    $region36: #{tpu_custom_call.1} parent=1 // pred_region
      %s625 = ssub.s32 32, 32
      %626 = vsyncadd [#allocation3], %s625
      %s628 = sshll.u32 [#allocation2], 4
      %s629 = int_to_ptr.vmem [resolvable:$true] %s628
      %631 = dma.vmem_to_hbm [thread:$0]  %s629, 32, %s8, [#allocation3]
    $region37: #{tpu_custom_call.1} parent=1 // pred_fallthru
      _
    // Predicated region
    $region38: #{tpu_custom_call.1} parent=1 // pred_check
      _
    $region39: #{tpu_custom_call.1} parent=1 // pred_check_branch
      %633 = sbr.rel (0) target = $region41
    $region40: #{tpu_custom_call.1} parent=1 // pred_region
      %634 = dma.done [#allocation3], 32
    $region41: #{tpu_custom_call.1} parent=1 // pred_fallthru
      _
    %635 = vsyncpa [#allocation3], 1

</llo_original>
